<compile_context>
chip_gen: v7x
topology: tpu7x:2x2x1
jax: 0.10.0
libtpu: 0.0.40
codegen_flags: <defaults>
</compile_context>

<pallas_src>
import jax
import jax.numpy as jnp
from jax.experimental import pallas as pl
from jax.experimental.pallas import tpu as pltpu

_EPS = 1e-8      # torch cosine_similarity default eps
_LANE = 128


def mem_kernel(inv_xn_ref, param_ref, x_ref, o_ref):
    """One O-tile of cosine_similarity(param, x[None, :], dim=1).

    inv_xn_ref : SMEM (1, 1) f32   -- precomputed 1 / max(||x||, eps)
    param_ref  : VMEM (TILE_O, I)  -- parameter rows of this tile (native dtype)
    x_ref      : VMEM (1, I)       -- query row (resident across the grid)
    o_ref      : VMEM (1, TILE_O)  -- lane-dense output row of this tile
    """
    p = param_ref[...]                                   # (TILE_O, I)
    x = x_ref[...]                                       # (1, I)

    # Row dot-products on the MXU; result is already lane-dense (1, TILE_O).
    dots = jax.lax.dot_general(
        x, p,
        dimension_numbers=(((1,), (1,)), ((), ())),
        preferred_element_type=jnp.float32,
        precision=jax.lax.Precision.HIGHEST)             # (1, TILE_O)

    # Row squared-norms via the MXU as ones(1,I) @ (p*p)^T -- avoids the XLU
    # cross-lane reduce and any sublane->lane relayout.
    pf = p.astype(jnp.float32)
    ones = jnp.ones((1, pf.shape[1]), dtype=jnp.float32)
    p_sq = jax.lax.dot_general(
        ones, pf * pf,
        dimension_numbers=(((1,), (1,)), ((), ())),
        preferred_element_type=jnp.float32,
        precision=jax.lax.Precision.HIGHEST)             # (1, TILE_O)

    # max(||p||, eps) == sqrt(max(||p||^2, eps^2)); rsqrt runs on the EUP.
    eps2 = jnp.float32(_EPS * _EPS)
    inv_p_norm = jax.lax.rsqrt(jnp.maximum(p_sq, eps2))  # (1, TILE_O)
    inv_x_norm = inv_xn_ref[0, 0]                        # scalar from SMEM

    o_ref[...] = (dots * inv_p_norm * inv_x_norm).astype(o_ref.dtype)


def mem_forward(param, x, max_tile_o=512, tile_budget_bytes=8 * 1024 * 1024):
    """JAX/Pallas equivalent of Mem.forward.

    param: (output_size, input_size)
    x:     (input_size,)
    returns: (output_size,) f32
    """
    O, I = param.shape
    itemsize = jnp.dtype(param.dtype).itemsize

    # Tile the O axis. Cap the tile so a double-buffered param tile stays well
    # inside the smallest scoped-VMEM budget (v5e 16 MiB default, v7x 64 MiB phys).
    rows_budget = tile_budget_bytes // max(1, 2 * I * itemsize)
    tile_cap = min(max_tile_o, max(_LANE, (rows_budget // _LANE) * _LANE))

    if O <= tile_cap:
        o_pad = max(_LANE, ((O + _LANE - 1) // _LANE) * _LANE)
        tile_o = o_pad
    else:
        tile_o = tile_cap
        o_pad = ((O + tile_o - 1) // tile_o) * tile_o

    param_p = param
    if o_pad != O:
        # Zero rows produce cos = 0 after eps clamping; sliced off below.
        param_p = jnp.zeros((o_pad, I), dtype=param.dtype).at[:O].set(param)

    # torch's x.unsqueeze(0); keep the param stream dtype on the matmul path.
    x2 = x.reshape(1, I).astype(param.dtype)

    # Hoist the query norm: a single scalar, computed once, passed via SMEM.
    xf = x.astype(jnp.float32)
    x_sq = jnp.sum(xf * xf)
    inv_x_norm = jax.lax.rsqrt(
        jnp.maximum(x_sq, jnp.float32(_EPS * _EPS))).reshape(1, 1)

    grid = (o_pad // tile_o,)
    out = pl.pallas_call(
        mem_kernel,
        out_shape=jax.ShapeDtypeStruct((1, o_pad), jnp.float32),
        grid=grid,
        in_specs=[
            pl.BlockSpec(memory_space=pltpu.MemorySpace.SMEM),   # inv_x_norm scalar
            pl.BlockSpec((tile_o, I), lambda i: (i, 0)),         # param tile (pipelined)
            pl.BlockSpec((1, I), lambda i: (0, 0)),              # resident query row
        ],
        out_specs=pl.BlockSpec((1, tile_o), lambda i: (0, i)),   # lane-dense output
        compiler_params=pltpu.CompilerParams(
            dimension_semantics=("parallel",),                   # megacore-shard O tiles
        ),
    )(inv_x_norm, param_p, x2)

    return out[0, :O]


def mem_forward_ref(param, x):
    # Pure-JAX reference of torch.cosine_similarity(param, x.unsqueeze(0), dim=1)
    x2 = x.reshape(1, -1).astype(jnp.float32)
    pf = param.astype(jnp.float32)
    dots = jnp.sum(pf * x2, axis=-1)
    p_norm = jnp.sqrt(jnp.sum(pf * pf, axis=-1))
    x_norm = jnp.sqrt(jnp.sum(x2 * x2, axis=-1))
    return dots / (jnp.maximum(p_norm, _EPS) * jnp.maximum(x_norm, _EPS))


if __name__ == "__main__":
    key = jax.random.PRNGKey(0)

    # Small shapes consistent with the module: (output_size, input_size).
    # Second config exercises the multi-tile grid + row-padding path.
    for (output_size, input_size) in [(16, 128), (640, 256)]:
        k_param, k_x, key = jax.random.split(key, 3)
        param = jax.random.normal(
            k_param, (output_size, input_size), dtype=jnp.float32)
        x = jax.random.normal(k_x, (input_size,), dtype=jnp.float32)

        o = jax.block_until_ready(mem_forward(param, x))
        o_ref = mem_forward_ref(param, x)

        assert o.shape == (output_size,)
        assert jnp.allclose(o, o_ref, atol=1e-4, rtol=1e-4), (
            float(jnp.max(jnp.abs(o - o_ref))))

    print("KERNEL_OK")
</pallas_src>

<mosaic_0001>
module attributes {stable_mosaic.version = 11 : i64} {
  func.func @mem_kernel(%arg0: i32, %arg1: memref<1x1xf32, #tpu.memory_space<smem>>, %arg2: memref<128x128xf32, #tpu.memory_space<vmem>>, %arg3: memref<1x128xf32, #tpu.memory_space<vmem>>, %arg4: memref<1x128xf32, #tpu.memory_space<vmem>>) attributes {dimension_semantics = [#tpu.dimension_semantics<parallel>], iteration_bounds = array<i64: 1>, scalar_prefetch = 0 : i64, scratch_operands = 0 : i64, tpu.core_type = #tpu.core_type<tc>, window_params = [{transform_indices = @transform_0, window_bounds = array<i64: 1, 1>}, {transform_indices = @transform_1, window_bounds = array<i64: 128, 128>}, {pipeline_mode = #tpu.pipeline_mode<synchronous>, transform_indices = @transform_2, window_bounds = array<i64: 1, 128>}, {transform_indices = @transform_3, window_bounds = array<i64: 1, 128>}]} {
    %c0 = arith.constant 0 : index
    %c0_0 = arith.constant 0 : index
    %0 = vector.load %arg2[%c0, %c0_0] : memref<128x128xf32, #tpu.memory_space<vmem>>, vector<128x128xf32>
    %c0_1 = arith.constant 0 : index
    %c0_2 = arith.constant 0 : index
    %1 = vector.load %arg3[%c0_1, %c0_2] : memref<1x128xf32, #tpu.memory_space<vmem>>, vector<1x128xf32>
    %cst = arith.constant dense<0.000000e+00> : vector<1x128xf32>
    %2 = tpu.matmul %1, %0, %cst {dimension_numbers = #tpu.dot_dimension_numbers<[1], [1], [0], [0], [0, 0, 1, 0], [], []>, precision = #tpu.contract_precision<fp32>} : vector<1x128xf32>, vector<128x128xf32>, vector<1x128xf32> -> vector<1x128xf32>
    %cst_3 = arith.constant 1.000000e+00 : f32
    %3 = vector.broadcast %cst_3 : f32 to vector<1x128xf32>
    %4 = arith.mulf %0, %0 : vector<128x128xf32>
    %cst_4 = arith.constant dense<0.000000e+00> : vector<1x128xf32>
    %5 = tpu.matmul %3, %4, %cst_4 {dimension_numbers = #tpu.dot_dimension_numbers<[1], [1], [0], [0], [0, 0, 1, 0], [], []>, precision = #tpu.contract_precision<fp32>} : vector<1x128xf32>, vector<128x128xf32>, vector<1x128xf32> -> vector<1x128xf32>
    %cst_5 = arith.constant 1.000000e-16 : f32
    %6 = vector.broadcast %cst_5 : f32 to vector<1x128xf32>
    %7 = arith.maximumf %5, %6 : vector<1x128xf32>
    %8 = math.rsqrt %7 : vector<1x128xf32>
    %c0_6 = arith.constant 0 : index
    %c0_7 = arith.constant 0 : index
    %9 = memref.load %arg1[%c0_6, %c0_7] : memref<1x1xf32, #tpu.memory_space<smem>>
    %10 = arith.mulf %2, %8 : vector<1x128xf32>
    %11 = vector.broadcast %9 : f32 to vector<1x128xf32>
    %12 = arith.mulf %10, %11 : vector<1x128xf32>
    %c0_8 = arith.constant 0 : index
    %c0_9 = arith.constant 0 : index
    %13 = vector.load %arg4[%c0_8, %c0_9] : memref<1x128xf32, #tpu.memory_space<vmem>>, vector<1x128xf32>
    tpu.vector_store %arg4[%c0_8, %c0_9], %12 {strides = array<i32>} : memref<1x128xf32, #tpu.memory_space<vmem>>, vector<1x128xf32>,
    return
  }
  func.func @transform_0(%arg0: i32) -> (i32, i32) {
    %c0_i32 = arith.constant 0 : i32
    %c0_i32_0 = arith.constant 0 : i32
    %c0_i32_1 = arith.constant 0 : i32
    return %c0_i32, %c0_i32_0 : i32, i32
  }
  func.func @transform_1(%arg0: i32) -> (i32, i32) {
    %c0_i32 = arith.constant 0 : i32
    %c0_i32_0 = arith.constant 0 : i32
    return %arg0, %c0_i32 : i32, i32
  }
  func.func @transform_2(%arg0: i32) -> (i32, i32) {
    %c0_i32 = arith.constant 0 : i32
    %c0_i32_0 = arith.constant 0 : i32
    %c0_i32_1 = arith.constant 0 : i32
    return %c0_i32, %c0_i32_0 : i32, i32
  }
  func.func @transform_3(%arg0: i32) -> (i32, i32) {
    %c0_i32 = arith.constant 0 : i32
    %c0_i32_0 = arith.constant 0 : i32
    return %c0_i32, %arg0 : i32, i32
  }
}

</mosaic_0001>

<llo_original>
// kernel: tpu_custom_call.1
$region0: #{tpu_custom_call.1}
  #allocation0 [shape = 'u32[]', space=smem, size = 0x4, offset = 0x4, fixed_abs, tag = 'smem constant byte address 0x4 - core index']
  #allocation1 [shape = 'u32[144,128]{1,0:T(1,128)}', space=vmem, size = 0x12000, scoped, tag = 'internal scratch']
  #allocation2 [shape = 'f32[1,1]{1,0:T(1,128)S(6)}', space=smem, size = 0x200, scoped, tag = 'scoped memory for tpu_custom_call.1']
  %s0 = inlined_call_operand.<no memory space> [shape: f32[1,1], index: 0, kind: input, shape index: {}]
  %s1 = inlined_call_operand.hbm [shape: f32[128,128], index: 1, kind: input, shape index: {}]
  %s2 = inlined_call_operand.vmem [shape: f32[1,128], index: 2, kind: input, shape index: {}]
  %s3 = inlined_call_operand.hbm [shape: f32[1,128], index: 3, kind: output, shape index: {}]
  %s4 = sld [smem:[#allocation0]]
  $region26: #{tpu_custom_call.1} parent=0
    _
  %s6 = ssub.s32 1, %s4
  %s7 = scalar_select 0, %s6, %s4
  %8 = sst [smem:[#allocation2]] %s0
  $region1: #{tpu_custom_call.1} parent=0
    #allocation3 [shape = 'u8[65536]{0}', space=vmem, size = 0x10000, scoped, tag = 'input window, operand 1, single buffered']
    #allocation4 [shape = 's32[1]{0}', space=sflag, size = 0x4, scoped, tag = 'scoped memory for tpu_custom_call.1']
    #allocation5 [shape = 's32[1]{0}', space=sflag, size = 0x4, scoped, tag = 'scoped memory for tpu_custom_call.1']
    #allocation6 [shape = 'u8[512]{0}', space=vmem, size = 0x400, scoped, tag = 'output window, operand 0, single buffered']
    %9 = vsyncpa [#allocation4], 0
    %10 = vsyncpa [#allocation5], 0
    // Predicated region
    $region2: #{tpu_custom_call.1} parent=1 // pred_check
      _
    $region3: #{tpu_custom_call.1} parent=1 // pred_check_branch
      %12 = sbr.rel (0) target = $region5
    $region4: #{tpu_custom_call.1} parent=1 // pred_region
      _
    $region5: #{tpu_custom_call.1} parent=1 // pred_fallthru
      _
    // Predicated region
    $region6: #{tpu_custom_call.1} parent=1 // pred_check
      _
    $region7: #{tpu_custom_call.1} parent=1 // pred_check_branch
      %14 = sbr.rel (0) target = $region9
    $region8: #{tpu_custom_call.1} parent=1 // pred_region
      %s16 = ssub.s32 2048, 2048
      %17 = vsyncadd [#allocation4], %s16
      %s18 = sshll.u32 [#allocation3], 4
      %s19 = int_to_ptr.vmem [resolvable:$true] %s18
      %24 = dma.hbm_to_vmem [thread:$0]  %s1, 2048, %s19, [#allocation4], 128, 128, 8
    $region9: #{tpu_custom_call.1} parent=1 // pred_fallthru
      _
    // Predicated region
    $region10: #{tpu_custom_call.1} parent=1 // pred_check
      _
    $region11: #{tpu_custom_call.1} parent=1 // pred_check_branch
      %26 = sbr.rel (0) target = $region13
    $region12: #{tpu_custom_call.1} parent=1 // pred_region
      _
    $region13: #{tpu_custom_call.1} parent=1 // pred_fallthru
      _
    // Predicated region
    $region14: #{tpu_custom_call.1} parent=1 // pred_check
      _
    $region15: #{tpu_custom_call.1} parent=1 // pred_check_branch
      %28 = sbr.rel (0) target = $region17
    $region16: #{tpu_custom_call.1} parent=1 // pred_region
      %29 = dma.done [#allocation4], 2048
    $region17: #{tpu_custom_call.1} parent=1 // pred_fallthru
      _
    %v30 = vld [vmem:[#allocation3] sm:$0xff]
    %v31 = vld [vmem:[#allocation3 + $0x8] sm:$0xff]
    %v32 = vld [vmem:[#allocation3 + $0x10] sm:$0xff]
    %v33 = vld [vmem:[#allocation3 + $0x18] sm:$0xff]
    %v34 = vld [vmem:[#allocation3 + $0x20] sm:$0xff]
    %v35 = vld [vmem:[#allocation3 + $0x28] sm:$0xff]
    %v36 = vld [vmem:[#allocation3 + $0x30] sm:$0xff]
    %v37 = vld [vmem:[#allocation3 + $0x38] sm:$0xff]
    %v38 = vld [vmem:[#allocation3 + $0x40] sm:$0xff]
    %v39 = vld [vmem:[#allocation3 + $0x48] sm:$0xff]
    %v40 = vld [vmem:[#allocation3 + $0x50] sm:$0xff]
    %v41 = vld [vmem:[#allocation3 + $0x58] sm:$0xff]
    %v42 = vld [vmem:[#allocation3 + $0x60] sm:$0xff]
    %v43 = vld [vmem:[#allocation3 + $0x68] sm:$0xff]
    %v44 = vld [vmem:[#allocation3 + $0x70] sm:$0xff]
    %v45 = vld [vmem:[#allocation3 + $0x78] sm:$0xff]
    %v46 = vld [vmem:[%s2] sm:$0x1]
    %47 = vmatprep.subr.mxu0 0.0
    %v48 = vand.u32 %v30, 4294901760
    %49 = vmatpush1.xpose.msra.mxu0 %v48
    %50 = vmatprep.subr.mxu0 0.0
    %v51 = vand.u32 %v31, 4294901760
    %52 = vmatpush1.xpose.msra.mxu0 %v51
    %53 = vmatprep.subr.mxu0 0.0
    %v54 = vand.u32 %v32, 4294901760
    %55 = vmatpush1.xpose.msra.mxu0 %v54
    %56 = vmatprep.subr.mxu0 0.0
    %v57 = vand.u32 %v33, 4294901760
    %58 = vmatpush1.xpose.msra.mxu0 %v57
    %59 = vmatprep.subr.mxu0 0.0
    %v60 = vand.u32 %v34, 4294901760
    %61 = vmatpush1.xpose.msra.mxu0 %v60
    %62 = vmatprep.subr.mxu0 0.0
    %v63 = vand.u32 %v35, 4294901760
    %64 = vmatpush1.xpose.msra.mxu0 %v63
    %65 = vmatprep.subr.mxu0 0.0
    %v66 = vand.u32 %v36, 4294901760
    %67 = vmatpush1.xpose.msra.mxu0 %v66
    %68 = vmatprep.subr.mxu0 0.0
    %v69 = vand.u32 %v37, 4294901760
    %70 = vmatpush1.xpose.msra.mxu0 %v69
    %71 = vmatprep.subr.mxu0 0.0
    %v72 = vand.u32 %v38, 4294901760
    %73 = vmatpush1.xpose.msra.mxu0 %v72
    %74 = vmatprep.subr.mxu0 0.0
    %v75 = vand.u32 %v39, 4294901760
    %76 = vmatpush1.xpose.msra.mxu0 %v75
    %77 = vmatprep.subr.mxu0 0.0
    %v78 = vand.u32 %v40, 4294901760
    %79 = vmatpush1.xpose.msra.mxu0 %v78
    %80 = vmatprep.subr.mxu0 0.0
    %v81 = vand.u32 %v41, 4294901760
    %82 = vmatpush1.xpose.msra.mxu0 %v81
    %83 = vmatprep.subr.mxu0 0.0
    %v84 = vand.u32 %v42, 4294901760
    %85 = vmatpush1.xpose.msra.mxu0 %v84
    %86 = vmatprep.subr.mxu0 0.0
    %v87 = vand.u32 %v43, 4294901760
    %88 = vmatpush1.xpose.msra.mxu0 %v87
    %89 = vmatprep.subr.mxu0 0.0
    %v90 = vand.u32 %v44, 4294901760
    %91 = vmatpush1.xpose.msra.mxu0 %v90
    %92 = vmatprep.subr.mxu0 0.0
    %v93 = vand.u32 %v45, 4294901760
    %94 = vmatpush1.xpose.msra.mxu0 %v93
    %95 = vmatprep.subr.mxu0 0.0
    %96 = vmatpush1.xpose.msra.mxu0 0.0
    %97 = vmatprep.subr.mxu0 0.0
    %98 = vmatpush1.xpose.msra.mxu0 0.0
    %99 = vmatprep.subr.mxu0 0.0
    %100 = vmatpush1.xpose.msra.mxu0 0.0
    %101 = vmatprep.subr.mxu0 0.0
    %102 = vmatpush1.xpose.msra.mxu0 0.0
    %103 = vmatprep.subr.mxu0 0.0
    %104 = vmatpush1.xpose.msra.mxu0 0.0
    %105 = vmatprep.subr.mxu0 0.0
    %106 = vmatpush1.xpose.msra.mxu0 0.0
    %107 = vmatprep.subr.mxu0 0.0
    %108 = vmatpush1.xpose.msra.mxu0 0.0
    %109 = vmatprep.subr.mxu0 0.0
    %110 = vmatpush1.xpose.msra.mxu0 0.0
    %111 = vmatprep.subr.mxu0 0.0
    %112 = vmatpush1.xpose.msra.mxu0 0.0
    %113 = vmatprep.subr.mxu0 0.0
    %114 = vmatpush1.xpose.msra.mxu0 0.0
    %115 = vmatprep.subr.mxu0 0.0
    %116 = vmatpush1.xpose.msra.mxu0 0.0
    %117 = vmatprep.subr.mxu0 0.0
    %118 = vmatpush1.xpose.msra.mxu0 0.0
    %119 = vmatprep.subr.mxu0 0.0
    %120 = vmatpush1.xpose.msra.mxu0 0.0
    %121 = vmatprep.subr.mxu0 0.0
    %122 = vmatpush1.xpose.msra.mxu0 0.0
    %123 = vmatprep.subr.mxu0 0.0
    %124 = vmatpush1.xpose.msra.mxu0 0.0
    %125 = vmatprep.subr.mxu0 0.0
    %126 = vmatpush1.xpose.msra.mxu0 0.0
    %127 = vmatprep.mubr.f32.mxu0 0.0
    %v128 = vand.u32 %v46, 4294901760
    %v129 = vsub.f32 %v46, %v128
    %v130 = vand.u32 %v129, 4294901760
    %v131 = vsub.f32 %v129, %v130
    %v132 = vand.u32 %v131, 4294901760
    %133 = vmatmul.mubr.f32.gmra.mrb[0].mxu0 %v132
    %v134 = vpop.f32.mrb[0].mxu0
    %v135 = vadd.f32 0.0, %v134
    %v136 = vpop.f32.mrb[0].mxu0
    %137 = vdwg.mxu0
    %138 = vmatprep.subr.mxu0 0.0
    %v139 = vand.u32 %v30, 4294901760
    %v140 = vsub.f32 %v30, %v139
    %v141 = vand.u32 %v140, 4294901760
    %v142 = vsub.f32 %v140, %v141
    %v143 = vand.u32 %v142, 4294901760
    %144 = vmatpush1.xpose.msra.mxu0 %v143
    %145 = vmatprep.subr.mxu0 0.0
    %v146 = vand.u32 %v31, 4294901760
    %v147 = vsub.f32 %v31, %v146
    %v148 = vand.u32 %v147, 4294901760
    %v149 = vsub.f32 %v147, %v148
    %v150 = vand.u32 %v149, 4294901760
    %151 = vmatpush1.xpose.msra.mxu0 %v150
    %152 = vmatprep.subr.mxu0 0.0
    %v153 = vand.u32 %v32, 4294901760
    %v154 = vsub.f32 %v32, %v153
    %v155 = vand.u32 %v154, 4294901760
    %v156 = vsub.f32 %v154, %v155
    %v157 = vand.u32 %v156, 4294901760
    %158 = vmatpush1.xpose.msra.mxu0 %v157
    %159 = vmatprep.subr.mxu0 0.0
    %v160 = vand.u32 %v33, 4294901760
    %v161 = vsub.f32 %v33, %v160
    %v162 = vand.u32 %v161, 4294901760
    %v163 = vsub.f32 %v161, %v162
    %v164 = vand.u32 %v163, 4294901760
    %165 = vmatpush1.xpose.msra.mxu0 %v164
    %166 = vmatprep.subr.mxu0 0.0
    %v167 = vand.u32 %v34, 4294901760
    %v168 = vsub.f32 %v34, %v167
    %v169 = vand.u32 %v168, 4294901760
    %v170 = vsub.f32 %v168, %v169
    %v171 = vand.u32 %v170, 4294901760
    %172 = vmatpush1.xpose.msra.mxu0 %v171
    %173 = vmatprep.subr.mxu0 0.0
    %v174 = vand.u32 %v35, 4294901760
    %v175 = vsub.f32 %v35, %v174
    %v176 = vand.u32 %v175, 4294901760
    %v177 = vsub.f32 %v175, %v176
    %v178 = vand.u32 %v177, 4294901760
    %179 = vmatpush1.xpose.msra.mxu0 %v178
    %180 = vmatprep.subr.mxu0 0.0
    %v181 = vand.u32 %v36, 4294901760
    %v182 = vsub.f32 %v36, %v181
    %v183 = vand.u32 %v182, 4294901760
    %v184 = vsub.f32 %v182, %v183
    %v185 = vand.u32 %v184, 4294901760
    %186 = vmatpush1.xpose.msra.mxu0 %v185
    %187 = vmatprep.subr.mxu0 0.0
    %v188 = vand.u32 %v37, 4294901760
    %v189 = vsub.f32 %v37, %v188
    %v190 = vand.u32 %v189, 4294901760
    %v191 = vsub.f32 %v189, %v190
    %v192 = vand.u32 %v191, 4294901760
    %193 = vmatpush1.xpose.msra.mxu0 %v192
    %194 = vmatprep.subr.mxu0 0.0
    %v195 = vand.u32 %v38, 4294901760
    %v196 = vsub.f32 %v38, %v195
    %v197 = vand.u32 %v196, 4294901760
    %v198 = vsub.f32 %v196, %v197
    %v199 = vand.u32 %v198, 4294901760
    %200 = vmatpush1.xpose.msra.mxu0 %v199
    %201 = vmatprep.subr.mxu0 0.0
    %v202 = vand.u32 %v39, 4294901760
    %v203 = vsub.f32 %v39, %v202
    %v204 = vand.u32 %v203, 4294901760
    %v205 = vsub.f32 %v203, %v204
    %v206 = vand.u32 %v205, 4294901760
    %207 = vmatpush1.xpose.msra.mxu0 %v206
    %208 = vmatprep.subr.mxu0 0.0
    %v209 = vand.u32 %v40, 4294901760
    %v210 = vsub.f32 %v40, %v209
    %v211 = vand.u32 %v210, 4294901760
    %v212 = vsub.f32 %v210, %v211
    %v213 = vand.u32 %v212, 4294901760
    %214 = vmatpush1.xpose.msra.mxu0 %v213
    %215 = vmatprep.subr.mxu0 0.0
    %v216 = vand.u32 %v41, 4294901760
    %v217 = vsub.f32 %v41, %v216
    %v218 = vand.u32 %v217, 4294901760
    %v219 = vsub.f32 %v217, %v218
    %v220 = vand.u32 %v219, 4294901760
    %221 = vmatpush1.xpose.msra.mxu0 %v220
    %222 = vmatprep.subr.mxu0 0.0
    %v223 = vand.u32 %v42, 4294901760
    %v224 = vsub.f32 %v42, %v223
    %v225 = vand.u32 %v224, 4294901760
    %v226 = vsub.f32 %v224, %v225
    %v227 = vand.u32 %v226, 4294901760
    %228 = vmatpush1.xpose.msra.mxu0 %v227
    %229 = vmatprep.subr.mxu0 0.0
    %v230 = vand.u32 %v43, 4294901760
    %v231 = vsub.f32 %v43, %v230
    %v232 = vand.u32 %v231, 4294901760
    %v233 = vsub.f32 %v231, %v232
    %v234 = vand.u32 %v233, 4294901760
    %235 = vmatpush1.xpose.msra.mxu0 %v234
    %236 = vmatprep.subr.mxu0 0.0
    %v237 = vand.u32 %v44, 4294901760
    %v238 = vsub.f32 %v44, %v237
    %v239 = vand.u32 %v238, 4294901760
    %v240 = vsub.f32 %v238, %v239
    %v241 = vand.u32 %v240, 4294901760
    %242 = vmatpush1.xpose.msra.mxu0 %v241
    %243 = vmatprep.subr.mxu0 0.0
    %v244 = vand.u32 %v45, 4294901760
    %v245 = vsub.f32 %v45, %v244
    %v246 = vand.u32 %v245, 4294901760
    %v247 = vsub.f32 %v245, %v246
    %v248 = vand.u32 %v247, 4294901760
    %249 = vmatpush1.xpose.msra.mxu0 %v248
    %250 = vmatprep.subr.mxu0 0.0
    %251 = vmatpush1.xpose.msra.mxu0 0.0
    %252 = vmatprep.subr.mxu0 0.0
    %253 = vmatpush1.xpose.msra.mxu0 0.0
    %254 = vmatprep.subr.mxu0 0.0
    %255 = vmatpush1.xpose.msra.mxu0 0.0
    %256 = vmatprep.subr.mxu0 0.0
    %257 = vmatpush1.xpose.msra.mxu0 0.0
    %258 = vmatprep.subr.mxu0 0.0
    %259 = vmatpush1.xpose.msra.mxu0 0.0
    %260 = vmatprep.subr.mxu0 0.0
    %261 = vmatpush1.xpose.msra.mxu0 0.0
    %262 = vmatprep.subr.mxu0 0.0
    %263 = vmatpush1.xpose.msra.mxu0 0.0
    %264 = vmatprep.subr.mxu0 0.0
    %265 = vmatpush1.xpose.msra.mxu0 0.0
    %266 = vmatprep.subr.mxu0 0.0
    %267 = vmatpush1.xpose.msra.mxu0 0.0
    %268 = vmatprep.subr.mxu0 0.0
    %269 = vmatpush1.xpose.msra.mxu0 0.0
    %270 = vmatprep.subr.mxu0 0.0
    %271 = vmatpush1.xpose.msra.mxu0 0.0
    %272 = vmatprep.subr.mxu0 0.0
    %273 = vmatpush1.xpose.msra.mxu0 0.0
    %274 = vmatprep.subr.mxu0 0.0
    %275 = vmatpush1.xpose.msra.mxu0 0.0
    %276 = vmatprep.subr.mxu0 0.0
    %277 = vmatpush1.xpose.msra.mxu0 0.0
    %278 = vmatprep.subr.mxu0 0.0
    %279 = vmatpush1.xpose.msra.mxu0 0.0
    %280 = vmatprep.subr.mxu0 0.0
    %281 = vmatpush1.xpose.msra.mxu0 0.0
    %282 = vmatprep.mubr.f32.mxu0 0.0
    %v283 = vand.u32 %v46, 4294901760
    %284 = vmatmul.mubr.f32.gmra.mrb[0].mxu0 %v283
    %v285 = vpop.f32.mrb[0].mxu0
    %v286 = vadd.f32 %v135, %v285
    %v287 = vpop.f32.mrb[0].mxu0
    %288 = vdwg.mxu0
    %289 = vmatprep.subr.mxu0 0.0
    %v290 = vand.u32 %v30, 4294901760
    %v291 = vsub.f32 %v30, %v290
    %292 = vmatpush1.xpose.msra.mxu0 %v291
    %293 = vmatprep.subr.mxu0 0.0
    %v294 = vand.u32 %v31, 4294901760
    %v295 = vsub.f32 %v31, %v294
    %296 = vmatpush1.xpose.msra.mxu0 %v295
    %297 = vmatprep.subr.mxu0 0.0
    %v298 = vand.u32 %v32, 4294901760
    %v299 = vsub.f32 %v32, %v298
    %300 = vmatpush1.xpose.msra.mxu0 %v299
    %301 = vmatprep.subr.mxu0 0.0
    %v302 = vand.u32 %v33, 4294901760
    %v303 = vsub.f32 %v33, %v302
    %304 = vmatpush1.xpose.msra.mxu0 %v303
    %305 = vmatprep.subr.mxu0 0.0
    %v306 = vand.u32 %v34, 4294901760
    %v307 = vsub.f32 %v34, %v306
    %308 = vmatpush1.xpose.msra.mxu0 %v307
    %309 = vmatprep.subr.mxu0 0.0
    %v310 = vand.u32 %v35, 4294901760
    %v311 = vsub.f32 %v35, %v310
    %312 = vmatpush1.xpose.msra.mxu0 %v311
    %313 = vmatprep.subr.mxu0 0.0
    %v314 = vand.u32 %v36, 4294901760
    %v315 = vsub.f32 %v36, %v314
    %316 = vmatpush1.xpose.msra.mxu0 %v315
    %317 = vmatprep.subr.mxu0 0.0
    %v318 = vand.u32 %v37, 4294901760
    %v319 = vsub.f32 %v37, %v318
    %320 = vmatpush1.xpose.msra.mxu0 %v319
    %321 = vmatprep.subr.mxu0 0.0
    %v322 = vand.u32 %v38, 4294901760
    %v323 = vsub.f32 %v38, %v322
    %324 = vmatpush1.xpose.msra.mxu0 %v323
    %325 = vmatprep.subr.mxu0 0.0
    %v326 = vand.u32 %v39, 4294901760
    %v327 = vsub.f32 %v39, %v326
    %328 = vmatpush1.xpose.msra.mxu0 %v327
    %329 = vmatprep.subr.mxu0 0.0
    %v330 = vand.u32 %v40, 4294901760
    %v331 = vsub.f32 %v40, %v330
    %332 = vmatpush1.xpose.msra.mxu0 %v331
    %333 = vmatprep.subr.mxu0 0.0
    %v334 = vand.u32 %v41, 4294901760
    %v335 = vsub.f32 %v41, %v334
    %336 = vmatpush1.xpose.msra.mxu0 %v335
    %337 = vmatprep.subr.mxu0 0.0
    %v338 = vand.u32 %v42, 4294901760
    %v339 = vsub.f32 %v42, %v338
    %340 = vmatpush1.xpose.msra.mxu0 %v339
    %341 = vmatprep.subr.mxu0 0.0
    %v342 = vand.u32 %v43, 4294901760
    %v343 = vsub.f32 %v43, %v342
    %344 = vmatpush1.xpose.msra.mxu0 %v343
    %345 = vmatprep.subr.mxu0 0.0
    %v346 = vand.u32 %v44, 4294901760
    %v347 = vsub.f32 %v44, %v346
    %348 = vmatpush1.xpose.msra.mxu0 %v347
    %349 = vmatprep.subr.mxu0 0.0
    %v350 = vand.u32 %v45, 4294901760
    %v351 = vsub.f32 %v45, %v350
    %352 = vmatpush1.xpose.msra.mxu0 %v351
    %353 = vmatprep.subr.mxu0 0.0
    %354 = vmatpush1.xpose.msra.mxu0 0.0
    %355 = vmatprep.subr.mxu0 0.0
    %356 = vmatpush1.xpose.msra.mxu0 0.0
    %357 = vmatprep.subr.mxu0 0.0
    %358 = vmatpush1.xpose.msra.mxu0 0.0
    %359 = vmatprep.subr.mxu0 0.0
    %360 = vmatpush1.xpose.msra.mxu0 0.0
    %361 = vmatprep.subr.mxu0 0.0
    %362 = vmatpush1.xpose.msra.mxu0 0.0
    %363 = vmatprep.subr.mxu0 0.0
    %364 = vmatpush1.xpose.msra.mxu0 0.0
    %365 = vmatprep.subr.mxu0 0.0
    %366 = vmatpush1.xpose.msra.mxu0 0.0
    %367 = vmatprep.subr.mxu0 0.0
    %368 = vmatpush1.xpose.msra.mxu0 0.0
    %369 = vmatprep.subr.mxu0 0.0
    %370 = vmatpush1.xpose.msra.mxu0 0.0
    %371 = vmatprep.subr.mxu0 0.0
    %372 = vmatpush1.xpose.msra.mxu0 0.0
    %373 = vmatprep.subr.mxu0 0.0
    %374 = vmatpush1.xpose.msra.mxu0 0.0
    %375 = vmatprep.subr.mxu0 0.0
    %376 = vmatpush1.xpose.msra.mxu0 0.0
    %377 = vmatprep.subr.mxu0 0.0
    %378 = vmatpush1.xpose.msra.mxu0 0.0
    %379 = vmatprep.subr.mxu0 0.0
    %380 = vmatpush1.xpose.msra.mxu0 0.0
    %381 = vmatprep.subr.mxu0 0.0
    %382 = vmatpush1.xpose.msra.mxu0 0.0
    %383 = vmatprep.subr.mxu0 0.0
    %384 = vmatpush1.xpose.msra.mxu0 0.0
    %385 = vmatprep.mubr.f32.mxu0 0.0
    %v386 = vand.u32 %v46, 4294901760
    %v387 = vsub.f32 %v46, %v386
    %388 = vmatmul.mubr.f32.gmra.mrb[0].mxu0 %v387
    %v389 = vpop.f32.mrb[0].mxu0
    %v390 = vadd.f32 %v286, %v389
    %v391 = vpop.f32.mrb[0].mxu0
    %392 = vdwg.mxu0
    %393 = vmatprep.subr.mxu0 0.0
    %v394 = vand.u32 %v30, 4294901760
    %395 = vmatpush1.xpose.msra.mxu0 %v394
    %396 = vmatprep.subr.mxu0 0.0
    %v397 = vand.u32 %v31, 4294901760
    %398 = vmatpush1.xpose.msra.mxu0 %v397
    %399 = vmatprep.subr.mxu0 0.0
    %v400 = vand.u32 %v32, 4294901760
    %401 = vmatpush1.xpose.msra.mxu0 %v400
    %402 = vmatprep.subr.mxu0 0.0
    %v403 = vand.u32 %v33, 4294901760
    %404 = vmatpush1.xpose.msra.mxu0 %v403
    %405 = vmatprep.subr.mxu0 0.0
    %v406 = vand.u32 %v34, 4294901760
    %407 = vmatpush1.xpose.msra.mxu0 %v406
    %408 = vmatprep.subr.mxu0 0.0
    %v409 = vand.u32 %v35, 4294901760
    %410 = vmatpush1.xpose.msra.mxu0 %v409
    %411 = vmatprep.subr.mxu0 0.0
    %v412 = vand.u32 %v36, 4294901760
    %413 = vmatpush1.xpose.msra.mxu0 %v412
    %414 = vmatprep.subr.mxu0 0.0
    %v415 = vand.u32 %v37, 4294901760
    %416 = vmatpush1.xpose.msra.mxu0 %v415
    %417 = vmatprep.subr.mxu0 0.0
    %v418 = vand.u32 %v38, 4294901760
    %419 = vmatpush1.xpose.msra.mxu0 %v418
    %420 = vmatprep.subr.mxu0 0.0
    %v421 = vand.u32 %v39, 4294901760
    %422 = vmatpush1.xpose.msra.mxu0 %v421
    %423 = vmatprep.subr.mxu0 0.0
    %v424 = vand.u32 %v40, 4294901760
    %425 = vmatpush1.xpose.msra.mxu0 %v424
    %426 = vmatprep.subr.mxu0 0.0
    %v427 = vand.u32 %v41, 4294901760
    %428 = vmatpush1.xpose.msra.mxu0 %v427
    %429 = vmatprep.subr.mxu0 0.0
    %v430 = vand.u32 %v42, 4294901760
    %431 = vmatpush1.xpose.msra.mxu0 %v430
    %432 = vmatprep.subr.mxu0 0.0
    %v433 = vand.u32 %v43, 4294901760
    %434 = vmatpush1.xpose.msra.mxu0 %v433
    %435 = vmatprep.subr.mxu0 0.0
    %v436 = vand.u32 %v44, 4294901760
    %437 = vmatpush1.xpose.msra.mxu0 %v436
    %438 = vmatprep.subr.mxu0 0.0
    %v439 = vand.u32 %v45, 4294901760
    %440 = vmatpush1.xpose.msra.mxu0 %v439
    %441 = vmatprep.subr.mxu0 0.0
    %442 = vmatpush1.xpose.msra.mxu0 0.0
    %443 = vmatprep.subr.mxu0 0.0
    %444 = vmatpush1.xpose.msra.mxu0 0.0
    %445 = vmatprep.subr.mxu0 0.0
    %446 = vmatpush1.xpose.msra.mxu0 0.0
    %447 = vmatprep.subr.mxu0 0.0
    %448 = vmatpush1.xpose.msra.mxu0 0.0
    %449 = vmatprep.subr.mxu0 0.0
    %450 = vmatpush1.xpose.msra.mxu0 0.0
    %451 = vmatprep.subr.mxu0 0.0
    %452 = vmatpush1.xpose.msra.mxu0 0.0
    %453 = vmatprep.subr.mxu0 0.0
    %454 = vmatpush1.xpose.msra.mxu0 0.0
    %455 = vmatprep.subr.mxu0 0.0
    %456 = vmatpush1.xpose.msra.mxu0 0.0
    %457 = vmatprep.subr.mxu0 0.0
    %458 = vmatpush1.xpose.msra.mxu0 0.0
    %459 = vmatprep.subr.mxu0 0.0
    %460 = vmatpush1.xpose.msra.mxu0 0.0
    %461 = vmatprep.subr.mxu0 0.0
    %462 = vmatpush1.xpose.msra.mxu0 0.0
    %463 = vmatprep.subr.mxu0 0.0
    %464 = vmatpush1.xpose.msra.mxu0 0.0
    %465 = vmatprep.subr.mxu0 0.0
    %466 = vmatpush1.xpose.msra.mxu0 0.0
    %467 = vmatprep.subr.mxu0 0.0
    %468 = vmatpush1.xpose.msra.mxu0 0.0
    %469 = vmatprep.subr.mxu0 0.0
    %470 = vmatpush1.xpose.msra.mxu0 0.0
    %471 = vmatprep.subr.mxu0 0.0
    %472 = vmatpush1.xpose.msra.mxu0 0.0
    %473 = vmatprep.mubr.f32.mxu0 0.0
    %v474 = vand.u32 %v46, 4294901760
    %v475 = vsub.f32 %v46, %v474
    %v476 = vand.u32 %v475, 4294901760
    %477 = vmatmul.mubr.f32.gmra.mrb[0].mxu0 %v476
    %v478 = vpop.f32.mrb[0].mxu0
    %v479 = vadd.f32 %v390, %v478
    %v480 = vpop.f32.mrb[0].mxu0
    %481 = vdwg.mxu0
    %482 = vmatprep.subr.mxu0 0.0
    %v483 = vand.u32 %v30, 4294901760
    %v484 = vsub.f32 %v30, %v483
    %v485 = vand.u32 %v484, 4294901760
    %486 = vmatpush1.xpose.msra.mxu0 %v485
    %487 = vmatprep.subr.mxu0 0.0
    %v488 = vand.u32 %v31, 4294901760
    %v489 = vsub.f32 %v31, %v488
    %v490 = vand.u32 %v489, 4294901760
    %491 = vmatpush1.xpose.msra.mxu0 %v490
    %492 = vmatprep.subr.mxu0 0.0
    %v493 = vand.u32 %v32, 4294901760
    %v494 = vsub.f32 %v32, %v493
    %v495 = vand.u32 %v494, 4294901760
    %496 = vmatpush1.xpose.msra.mxu0 %v495
    %497 = vmatprep.subr.mxu0 0.0
    %v498 = vand.u32 %v33, 4294901760
    %v499 = vsub.f32 %v33, %v498
    %v500 = vand.u32 %v499, 4294901760
    %501 = vmatpush1.xpose.msra.mxu0 %v500
    %502 = vmatprep.subr.mxu0 0.0
    %v503 = vand.u32 %v34, 4294901760
    %v504 = vsub.f32 %v34, %v503
    %v505 = vand.u32 %v504, 4294901760
    %506 = vmatpush1.xpose.msra.mxu0 %v505
    %507 = vmatprep.subr.mxu0 0.0
    %v508 = vand.u32 %v35, 4294901760
    %v509 = vsub.f32 %v35, %v508
    %v510 = vand.u32 %v509, 4294901760
    %511 = vmatpush1.xpose.msra.mxu0 %v510
    %512 = vmatprep.subr.mxu0 0.0
    %v513 = vand.u32 %v36, 4294901760
    %v514 = vsub.f32 %v36, %v513
    %v515 = vand.u32 %v514, 4294901760
    %516 = vmatpush1.xpose.msra.mxu0 %v515
    %517 = vmatprep.subr.mxu0 0.0
    %v518 = vand.u32 %v37, 4294901760
    %v519 = vsub.f32 %v37, %v518
    %v520 = vand.u32 %v519, 4294901760
    %521 = vmatpush1.xpose.msra.mxu0 %v520
    %522 = vmatprep.subr.mxu0 0.0
    %v523 = vand.u32 %v38, 4294901760
    %v524 = vsub.f32 %v38, %v523
    %v525 = vand.u32 %v524, 4294901760
    %526 = vmatpush1.xpose.msra.mxu0 %v525
    %527 = vmatprep.subr.mxu0 0.0
    %v528 = vand.u32 %v39, 4294901760
    %v529 = vsub.f32 %v39, %v528
    %v530 = vand.u32 %v529, 4294901760
    %531 = vmatpush1.xpose.msra.mxu0 %v530
    %532 = vmatprep.subr.mxu0 0.0
    %v533 = vand.u32 %v40, 4294901760
    %v534 = vsub.f32 %v40, %v533
    %v535 = vand.u32 %v534, 4294901760
    %536 = vmatpush1.xpose.msra.mxu0 %v535
    %537 = vmatprep.subr.mxu0 0.0
    %v538 = vand.u32 %v41, 4294901760
    %v539 = vsub.f32 %v41, %v538
    %v540 = vand.u32 %v539, 4294901760
    %541 = vmatpush1.xpose.msra.mxu0 %v540
    %542 = vmatprep.subr.mxu0 0.0
    %v543 = vand.u32 %v42, 4294901760
    %v544 = vsub.f32 %v42, %v543
    %v545 = vand.u32 %v544, 4294901760
    %546 = vmatpush1.xpose.msra.mxu0 %v545
    %547 = vmatprep.subr.mxu0 0.0
    %v548 = vand.u32 %v43, 4294901760
    %v549 = vsub.f32 %v43, %v548
    %v550 = vand.u32 %v549, 4294901760
    %551 = vmatpush1.xpose.msra.mxu0 %v550
    %552 = vmatprep.subr.mxu0 0.0
    %v553 = vand.u32 %v44, 4294901760
    %v554 = vsub.f32 %v44, %v553
    %v555 = vand.u32 %v554, 4294901760
    %556 = vmatpush1.xpose.msra.mxu0 %v555
    %557 = vmatprep.subr.mxu0 0.0
    %v558 = vand.u32 %v45, 4294901760
    %v559 = vsub.f32 %v45, %v558
    %v560 = vand.u32 %v559, 4294901760
    %561 = vmatpush1.xpose.msra.mxu0 %v560
    %562 = vmatprep.subr.mxu0 0.0
    %563 = vmatpush1.xpose.msra.mxu0 0.0
    %564 = vmatprep.subr.mxu0 0.0
    %565 = vmatpush1.xpose.msra.mxu0 0.0
    %566 = vmatprep.subr.mxu0 0.0
    %567 = vmatpush1.xpose.msra.mxu0 0.0
    %568 = vmatprep.subr.mxu0 0.0
    %569 = vmatpush1.xpose.msra.mxu0 0.0
    %570 = vmatprep.subr.mxu0 0.0
    %571 = vmatpush1.xpose.msra.mxu0 0.0
    %572 = vmatprep.subr.mxu0 0.0
    %573 = vmatpush1.xpose.msra.mxu0 0.0
    %574 = vmatprep.subr.mxu0 0.0
    %575 = vmatpush1.xpose.msra.mxu0 0.0
    %576 = vmatprep.subr.mxu0 0.0
    %577 = vmatpush1.xpose.msra.mxu0 0.0
    %578 = vmatprep.subr.mxu0 0.0
    %579 = vmatpush1.xpose.msra.mxu0 0.0
    %580 = vmatprep.subr.mxu0 0.0
    %581 = vmatpush1.xpose.msra.mxu0 0.0
    %582 = vmatprep.subr.mxu0 0.0
    %583 = vmatpush1.xpose.msra.mxu0 0.0
    %584 = vmatprep.subr.mxu0 0.0
    %585 = vmatpush1.xpose.msra.mxu0 0.0
    %586 = vmatprep.subr.mxu0 0.0
    %587 = vmatpush1.xpose.msra.mxu0 0.0
    %588 = vmatprep.subr.mxu0 0.0
    %589 = vmatpush1.xpose.msra.mxu0 0.0
    %590 = vmatprep.subr.mxu0 0.0
    %591 = vmatpush1.xpose.msra.mxu0 0.0
    %592 = vmatprep.subr.mxu0 0.0
    %593 = vmatpush1.xpose.msra.mxu0 0.0
    %594 = vmatprep.mubr.f32.mxu0 0.0
    %v595 = vand.u32 %v46, 4294901760
    %596 = vmatmul.mubr.f32.gmra.mrb[0].mxu0 %v595
    %v597 = vpop.f32.mrb[0].mxu0
    %v598 = vadd.f32 %v479, %v597
    %v599 = vpop.f32.mrb[0].mxu0
    %600 = vdwg.mxu0
    %601 = vmatprep.subr.mxu0 0.0
    %v602 = vand.u32 %v30, 4294901760
    %603 = vmatpush1.xpose.msra.mxu0 %v602
    %604 = vmatprep.subr.mxu0 0.0
    %v605 = vand.u32 %v31, 4294901760
    %606 = vmatpush1.xpose.msra.mxu0 %v605
    %607 = vmatprep.subr.mxu0 0.0
    %v608 = vand.u32 %v32, 4294901760
    %609 = vmatpush1.xpose.msra.mxu0 %v608
    %610 = vmatprep.subr.mxu0 0.0
    %v611 = vand.u32 %v33, 4294901760
    %612 = vmatpush1.xpose.msra.mxu0 %v611
    %613 = vmatprep.subr.mxu0 0.0
    %v614 = vand.u32 %v34, 4294901760
    %615 = vmatpush1.xpose.msra.mxu0 %v614
    %616 = vmatprep.subr.mxu0 0.0
    %v617 = vand.u32 %v35, 4294901760
    %618 = vmatpush1.xpose.msra.mxu0 %v617
    %619 = vmatprep.subr.mxu0 0.0
    %v620 = vand.u32 %v36, 4294901760
    %621 = vmatpush1.xpose.msra.mxu0 %v620
    %622 = vmatprep.subr.mxu0 0.0
    %v623 = vand.u32 %v37, 4294901760
    %624 = vmatpush1.xpose.msra.mxu0 %v623
    %625 = vmatprep.subr.mxu0 0.0
    %v626 = vand.u32 %v38, 4294901760
    %627 = vmatpush1.xpose.msra.mxu0 %v626
    %628 = vmatprep.subr.mxu0 0.0
    %v629 = vand.u32 %v39, 4294901760
    %630 = vmatpush1.xpose.msra.mxu0 %v629
    %631 = vmatprep.subr.mxu0 0.0
    %v632 = vand.u32 %v40, 4294901760
    %633 = vmatpush1.xpose.msra.mxu0 %v632
    %634 = vmatprep.subr.mxu0 0.0
    %v635 = vand.u32 %v41, 4294901760
    %636 = vmatpush1.xpose.msra.mxu0 %v635
    %637 = vmatprep.subr.mxu0 0.0
    %v638 = vand.u32 %v42, 4294901760
    %639 = vmatpush1.xpose.msra.mxu0 %v638
    %640 = vmatprep.subr.mxu0 0.0
    %v641 = vand.u32 %v43, 4294901760
    %642 = vmatpush1.xpose.msra.mxu0 %v641
    %643 = vmatprep.subr.mxu0 0.0
    %v644 = vand.u32 %v44, 4294901760
    %645 = vmatpush1.xpose.msra.mxu0 %v644
    %646 = vmatprep.subr.mxu0 0.0
    %v647 = vand.u32 %v45, 4294901760
    %648 = vmatpush1.xpose.msra.mxu0 %v647
    %649 = vmatprep.subr.mxu0 0.0
    %650 = vmatpush1.xpose.msra.mxu0 0.0
    %651 = vmatprep.subr.mxu0 0.0
    %652 = vmatpush1.xpose.msra.mxu0 0.0
    %653 = vmatprep.subr.mxu0 0.0
    %654 = vmatpush1.xpose.msra.mxu0 0.0
    %655 = vmatprep.subr.mxu0 0.0
    %656 = vmatpush1.xpose.msra.mxu0 0.0
    %657 = vmatprep.subr.mxu0 0.0
    %658 = vmatpush1.xpose.msra.mxu0 0.0
    %659 = vmatprep.subr.mxu0 0.0
    %660 = vmatpush1.xpose.msra.mxu0 0.0
    %661 = vmatprep.subr.mxu0 0.0
    %662 = vmatpush1.xpose.msra.mxu0 0.0
    %663 = vmatprep.subr.mxu0 0.0
    %664 = vmatpush1.xpose.msra.mxu0 0.0
    %665 = vmatprep.subr.mxu0 0.0
    %666 = vmatpush1.xpose.msra.mxu0 0.0
    %667 = vmatprep.subr.mxu0 0.0
    %668 = vmatpush1.xpose.msra.mxu0 0.0
    %669 = vmatprep.subr.mxu0 0.0
    %670 = vmatpush1.xpose.msra.mxu0 0.0
    %671 = vmatprep.subr.mxu0 0.0
    %672 = vmatpush1.xpose.msra.mxu0 0.0
    %673 = vmatprep.subr.mxu0 0.0
    %674 = vmatpush1.xpose.msra.mxu0 0.0
    %675 = vmatprep.subr.mxu0 0.0
    %676 = vmatpush1.xpose.msra.mxu0 0.0
    %677 = vmatprep.subr.mxu0 0.0
    %678 = vmatpush1.xpose.msra.mxu0 0.0
    %679 = vmatprep.subr.mxu0 0.0
    %680 = vmatpush1.xpose.msra.mxu0 0.0
    %681 = vmatprep.mubr.f32.mxu0 0.0
    %v682 = vand.u32 %v46, 4294901760
    %683 = vmatmul.mubr.f32.gmra.mrb[0].mxu0 %v682
    %v684 = vpop.f32.mrb[0].mxu0
    %v685 = vadd.f32 %v598, %v684
    %v686 = vpop.f32.mrb[0].mxu0
    %687 = vdwg.mxu0
    %v688 = vmul.f32 %v30, %v30
    %v689 = vmul.f32 %v31, %v31
    %v690 = vmul.f32 %v32, %v32
    %v691 = vmul.f32 %v33, %v33
    %v692 = vmul.f32 %v34, %v34
    %v693 = vmul.f32 %v35, %v35
    %v694 = vmul.f32 %v36, %v36
    %v695 = vmul.f32 %v37, %v37
    %v696 = vmul.f32 %v38, %v38
    %v697 = vmul.f32 %v39, %v39
    %v698 = vmul.f32 %v40, %v40
    %v699 = vmul.f32 %v41, %v41
    %v700 = vmul.f32 %v42, %v42
    %v701 = vmul.f32 %v43, %v43
    %v702 = vmul.f32 %v44, %v44
    %v703 = vmul.f32 %v45, %v45
    %704 = vmatprep.subr.mxu0 0.0
    %v705 = vand.u32 %v688, 4294901760
    %706 = vmatpush1.xpose.msra.mxu0 %v705
    %707 = vmatprep.subr.mxu0 0.0
    %v708 = vand.u32 %v689, 4294901760
    %709 = vmatpush1.xpose.msra.mxu0 %v708
    %710 = vmatprep.subr.mxu0 0.0
    %v711 = vand.u32 %v690, 4294901760
    %712 = vmatpush1.xpose.msra.mxu0 %v711
    %713 = vmatprep.subr.mxu0 0.0
    %v714 = vand.u32 %v691, 4294901760
    %715 = vmatpush1.xpose.msra.mxu0 %v714
    %716 = vmatprep.subr.mxu0 0.0
    %v717 = vand.u32 %v692, 4294901760
    %718 = vmatpush1.xpose.msra.mxu0 %v717
    %719 = vmatprep.subr.mxu0 0.0
    %v720 = vand.u32 %v693, 4294901760
    %721 = vmatpush1.xpose.msra.mxu0 %v720
    %722 = vmatprep.subr.mxu0 0.0
    %v723 = vand.u32 %v694, 4294901760
    %724 = vmatpush1.xpose.msra.mxu0 %v723
    %725 = vmatprep.subr.mxu0 0.0
    %v726 = vand.u32 %v695, 4294901760
    %727 = vmatpush1.xpose.msra.mxu0 %v726
    %728 = vmatprep.subr.mxu0 0.0
    %v729 = vand.u32 %v696, 4294901760
    %730 = vmatpush1.xpose.msra.mxu0 %v729
    %731 = vmatprep.subr.mxu0 0.0
    %v732 = vand.u32 %v697, 4294901760
    %733 = vmatpush1.xpose.msra.mxu0 %v732
    %734 = vmatprep.subr.mxu0 0.0
    %v735 = vand.u32 %v698, 4294901760
    %736 = vmatpush1.xpose.msra.mxu0 %v735
    %737 = vmatprep.subr.mxu0 0.0
    %v738 = vand.u32 %v699, 4294901760
    %739 = vmatpush1.xpose.msra.mxu0 %v738
    %740 = vmatprep.subr.mxu0 0.0
    %v741 = vand.u32 %v700, 4294901760
    %742 = vmatpush1.xpose.msra.mxu0 %v741
    %743 = vmatprep.subr.mxu0 0.0
    %v744 = vand.u32 %v701, 4294901760
    %745 = vmatpush1.xpose.msra.mxu0 %v744
    %746 = vmatprep.subr.mxu0 0.0
    %v747 = vand.u32 %v702, 4294901760
    %748 = vmatpush1.xpose.msra.mxu0 %v747
    %749 = vmatprep.subr.mxu0 0.0
    %v750 = vand.u32 %v703, 4294901760
    %751 = vmatpush1.xpose.msra.mxu0 %v750
    %752 = vmatprep.subr.mxu0 0.0
    %753 = vmatpush1.xpose.msra.mxu0 0.0
    %754 = vmatprep.subr.mxu0 0.0
    %755 = vmatpush1.xpose.msra.mxu0 0.0
    %756 = vmatprep.subr.mxu0 0.0
    %757 = vmatpush1.xpose.msra.mxu0 0.0
    %758 = vmatprep.subr.mxu0 0.0
    %759 = vmatpush1.xpose.msra.mxu0 0.0
    %760 = vmatprep.subr.mxu0 0.0
    %761 = vmatpush1.xpose.msra.mxu0 0.0
    %762 = vmatprep.subr.mxu0 0.0
    %763 = vmatpush1.xpose.msra.mxu0 0.0
    %764 = vmatprep.subr.mxu0 0.0
    %765 = vmatpush1.xpose.msra.mxu0 0.0
    %766 = vmatprep.subr.mxu0 0.0
    %767 = vmatpush1.xpose.msra.mxu0 0.0
    %768 = vmatprep.subr.mxu0 0.0
    %769 = vmatpush1.xpose.msra.mxu0 0.0
    %770 = vmatprep.subr.mxu0 0.0
    %771 = vmatpush1.xpose.msra.mxu0 0.0
    %772 = vmatprep.subr.mxu0 0.0
    %773 = vmatpush1.xpose.msra.mxu0 0.0
    %774 = vmatprep.subr.mxu0 0.0
    %775 = vmatpush1.xpose.msra.mxu0 0.0
    %776 = vmatprep.subr.mxu0 0.0
    %777 = vmatpush1.xpose.msra.mxu0 0.0
    %778 = vmatprep.subr.mxu0 0.0
    %779 = vmatpush1.xpose.msra.mxu0 0.0
    %780 = vmatprep.subr.mxu0 0.0
    %781 = vmatpush1.xpose.msra.mxu0 0.0
    %782 = vmatprep.subr.mxu0 0.0
    %783 = vmatpush1.xpose.msra.mxu0 0.0
    %784 = vmatprep.mubr.f32.mxu0 0.0
    %785 = vmatmul.mubr.f32.gmra.mrb[0].mxu0 0.0
    %v786 = vpop.f32.mrb[0].mxu0
    %v787 = vadd.f32 0.0, %v786
    %v788 = vpop.f32.mrb[0].mxu0
    %789 = vdwg.mxu0
    %790 = vmatprep.subr.mxu0 0.0
    %v791 = vand.u32 %v688, 4294901760
    %v792 = vsub.f32 %v688, %v791
    %v793 = vand.u32 %v792, 4294901760
    %v794 = vsub.f32 %v792, %v793
    %v795 = vand.u32 %v794, 4294901760
    %796 = vmatpush1.xpose.msra.mxu0 %v795
    %797 = vmatprep.subr.mxu0 0.0
    %v798 = vand.u32 %v689, 4294901760
    %v799 = vsub.f32 %v689, %v798
    %v800 = vand.u32 %v799, 4294901760
    %v801 = vsub.f32 %v799, %v800
    %v802 = vand.u32 %v801, 4294901760
    %803 = vmatpush1.xpose.msra.mxu0 %v802
    %804 = vmatprep.subr.mxu0 0.0
    %v805 = vand.u32 %v690, 4294901760
    %v806 = vsub.f32 %v690, %v805
    %v807 = vand.u32 %v806, 4294901760
    %v808 = vsub.f32 %v806, %v807
    %v809 = vand.u32 %v808, 4294901760
    %810 = vmatpush1.xpose.msra.mxu0 %v809
    %811 = vmatprep.subr.mxu0 0.0
    %v812 = vand.u32 %v691, 4294901760
    %v813 = vsub.f32 %v691, %v812
    %v814 = vand.u32 %v813, 4294901760
    %v815 = vsub.f32 %v813, %v814
    %v816 = vand.u32 %v815, 4294901760
    %817 = vmatpush1.xpose.msra.mxu0 %v816
    %818 = vmatprep.subr.mxu0 0.0
    %v819 = vand.u32 %v692, 4294901760
    %v820 = vsub.f32 %v692, %v819
    %v821 = vand.u32 %v820, 4294901760
    %v822 = vsub.f32 %v820, %v821
    %v823 = vand.u32 %v822, 4294901760
    %824 = vmatpush1.xpose.msra.mxu0 %v823
    %825 = vmatprep.subr.mxu0 0.0
    %v826 = vand.u32 %v693, 4294901760
    %v827 = vsub.f32 %v693, %v826
    %v828 = vand.u32 %v827, 4294901760
    %v829 = vsub.f32 %v827, %v828
    %v830 = vand.u32 %v829, 4294901760
    %831 = vmatpush1.xpose.msra.mxu0 %v830
    %832 = vmatprep.subr.mxu0 0.0
    %v833 = vand.u32 %v694, 4294901760
    %v834 = vsub.f32 %v694, %v833
    %v835 = vand.u32 %v834, 4294901760
    %v836 = vsub.f32 %v834, %v835
    %v837 = vand.u32 %v836, 4294901760
    %838 = vmatpush1.xpose.msra.mxu0 %v837
    %839 = vmatprep.subr.mxu0 0.0
    %v840 = vand.u32 %v695, 4294901760
    %v841 = vsub.f32 %v695, %v840
    %v842 = vand.u32 %v841, 4294901760
    %v843 = vsub.f32 %v841, %v842
    %v844 = vand.u32 %v843, 4294901760
    %845 = vmatpush1.xpose.msra.mxu0 %v844
    %846 = vmatprep.subr.mxu0 0.0
    %v847 = vand.u32 %v696, 4294901760
    %v848 = vsub.f32 %v696, %v847
    %v849 = vand.u32 %v848, 4294901760
    %v850 = vsub.f32 %v848, %v849
    %v851 = vand.u32 %v850, 4294901760
    %852 = vmatpush1.xpose.msra.mxu0 %v851
    %853 = vmatprep.subr.mxu0 0.0
    %v854 = vand.u32 %v697, 4294901760
    %v855 = vsub.f32 %v697, %v854
    %v856 = vand.u32 %v855, 4294901760
    %v857 = vsub.f32 %v855, %v856
    %v858 = vand.u32 %v857, 4294901760
    %859 = vmatpush1.xpose.msra.mxu0 %v858
    %860 = vmatprep.subr.mxu0 0.0
    %v861 = vand.u32 %v698, 4294901760
    %v862 = vsub.f32 %v698, %v861
    %v863 = vand.u32 %v862, 4294901760
    %v864 = vsub.f32 %v862, %v863
    %v865 = vand.u32 %v864, 4294901760
    %866 = vmatpush1.xpose.msra.mxu0 %v865
    %867 = vmatprep.subr.mxu0 0.0
    %v868 = vand.u32 %v699, 4294901760
    %v869 = vsub.f32 %v699, %v868
    %v870 = vand.u32 %v869, 4294901760
    %v871 = vsub.f32 %v869, %v870
    %v872 = vand.u32 %v871, 4294901760
    %873 = vmatpush1.xpose.msra.mxu0 %v872
    %874 = vmatprep.subr.mxu0 0.0
    %v875 = vand.u32 %v700, 4294901760
    %v876 = vsub.f32 %v700, %v875
    %v877 = vand.u32 %v876, 4294901760
    %v878 = vsub.f32 %v876, %v877
    %v879 = vand.u32 %v878, 4294901760
    %880 = vmatpush1.xpose.msra.mxu0 %v879
    %881 = vmatprep.subr.mxu0 0.0
    %v882 = vand.u32 %v701, 4294901760
    %v883 = vsub.f32 %v701, %v882
    %v884 = vand.u32 %v883, 4294901760
    %v885 = vsub.f32 %v883, %v884
    %v886 = vand.u32 %v885, 4294901760
    %887 = vmatpush1.xpose.msra.mxu0 %v886
    %888 = vmatprep.subr.mxu0 0.0
    %v889 = vand.u32 %v702, 4294901760
    %v890 = vsub.f32 %v702, %v889
    %v891 = vand.u32 %v890, 4294901760
    %v892 = vsub.f32 %v890, %v891
    %v893 = vand.u32 %v892, 4294901760
    %894 = vmatpush1.xpose.msra.mxu0 %v893
    %895 = vmatprep.subr.mxu0 0.0
    %v896 = vand.u32 %v703, 4294901760
    %v897 = vsub.f32 %v703, %v896
    %v898 = vand.u32 %v897, 4294901760
    %v899 = vsub.f32 %v897, %v898
    %v900 = vand.u32 %v899, 4294901760
    %901 = vmatpush1.xpose.msra.mxu0 %v900
    %902 = vmatprep.subr.mxu0 0.0
    %903 = vmatpush1.xpose.msra.mxu0 0.0
    %904 = vmatprep.subr.mxu0 0.0
    %905 = vmatpush1.xpose.msra.mxu0 0.0
    %906 = vmatprep.subr.mxu0 0.0
    %907 = vmatpush1.xpose.msra.mxu0 0.0
    %908 = vmatprep.subr.mxu0 0.0
    %909 = vmatpush1.xpose.msra.mxu0 0.0
    %910 = vmatprep.subr.mxu0 0.0
    %911 = vmatpush1.xpose.msra.mxu0 0.0
    %912 = vmatprep.subr.mxu0 0.0
    %913 = vmatpush1.xpose.msra.mxu0 0.0
    %914 = vmatprep.subr.mxu0 0.0
    %915 = vmatpush1.xpose.msra.mxu0 0.0
    %916 = vmatprep.subr.mxu0 0.0
    %917 = vmatpush1.xpose.msra.mxu0 0.0
    %918 = vmatprep.subr.mxu0 0.0
    %919 = vmatpush1.xpose.msra.mxu0 0.0
    %920 = vmatprep.subr.mxu0 0.0
    %921 = vmatpush1.xpose.msra.mxu0 0.0
    %922 = vmatprep.subr.mxu0 0.0
    %923 = vmatpush1.xpose.msra.mxu0 0.0
    %924 = vmatprep.subr.mxu0 0.0
    %925 = vmatpush1.xpose.msra.mxu0 0.0
    %926 = vmatprep.subr.mxu0 0.0
    %927 = vmatpush1.xpose.msra.mxu0 0.0
    %928 = vmatprep.subr.mxu0 0.0
    %929 = vmatpush1.xpose.msra.mxu0 0.0
    %930 = vmatprep.subr.mxu0 0.0
    %931 = vmatpush1.xpose.msra.mxu0 0.0
    %932 = vmatprep.subr.mxu0 0.0
    %933 = vmatpush1.xpose.msra.mxu0 0.0
    %934 = vmatprep.mubr.f32.mxu0 0.0
    %935 = vmatmul.mubr.f32.gmra.mrb[0].mxu0 1.0
    %v936 = vpop.f32.mrb[0].mxu0
    %v937 = vadd.f32 %v787, %v936
    %v938 = vpop.f32.mrb[0].mxu0
    %939 = vdwg.mxu0
    %940 = vmatprep.subr.mxu0 0.0
    %v941 = vand.u32 %v688, 4294901760
    %v942 = vsub.f32 %v688, %v941
    %943 = vmatpush1.xpose.msra.mxu0 %v942
    %944 = vmatprep.subr.mxu0 0.0
    %v945 = vand.u32 %v689, 4294901760
    %v946 = vsub.f32 %v689, %v945
    %947 = vmatpush1.xpose.msra.mxu0 %v946
    %948 = vmatprep.subr.mxu0 0.0
    %v949 = vand.u32 %v690, 4294901760
    %v950 = vsub.f32 %v690, %v949
    %951 = vmatpush1.xpose.msra.mxu0 %v950
    %952 = vmatprep.subr.mxu0 0.0
    %v953 = vand.u32 %v691, 4294901760
    %v954 = vsub.f32 %v691, %v953
    %955 = vmatpush1.xpose.msra.mxu0 %v954
    %956 = vmatprep.subr.mxu0 0.0
    %v957 = vand.u32 %v692, 4294901760
    %v958 = vsub.f32 %v692, %v957
    %959 = vmatpush1.xpose.msra.mxu0 %v958
    %960 = vmatprep.subr.mxu0 0.0
    %v961 = vand.u32 %v693, 4294901760
    %v962 = vsub.f32 %v693, %v961
    %963 = vmatpush1.xpose.msra.mxu0 %v962
    %964 = vmatprep.subr.mxu0 0.0
    %v965 = vand.u32 %v694, 4294901760
    %v966 = vsub.f32 %v694, %v965
    %967 = vmatpush1.xpose.msra.mxu0 %v966
    %968 = vmatprep.subr.mxu0 0.0
    %v969 = vand.u32 %v695, 4294901760
    %v970 = vsub.f32 %v695, %v969
    %971 = vmatpush1.xpose.msra.mxu0 %v970
    %972 = vmatprep.subr.mxu0 0.0
    %v973 = vand.u32 %v696, 4294901760
    %v974 = vsub.f32 %v696, %v973
    %975 = vmatpush1.xpose.msra.mxu0 %v974
    %976 = vmatprep.subr.mxu0 0.0
    %v977 = vand.u32 %v697, 4294901760
    %v978 = vsub.f32 %v697, %v977
    %979 = vmatpush1.xpose.msra.mxu0 %v978
    %980 = vmatprep.subr.mxu0 0.0
    %v981 = vand.u32 %v698, 4294901760
    %v982 = vsub.f32 %v698, %v981
    %983 = vmatpush1.xpose.msra.mxu0 %v982
    %984 = vmatprep.subr.mxu0 0.0
    %v985 = vand.u32 %v699, 4294901760
    %v986 = vsub.f32 %v699, %v985
    %987 = vmatpush1.xpose.msra.mxu0 %v986
    %988 = vmatprep.subr.mxu0 0.0
    %v989 = vand.u32 %v700, 4294901760
    %v990 = vsub.f32 %v700, %v989
    %991 = vmatpush1.xpose.msra.mxu0 %v990
    %992 = vmatprep.subr.mxu0 0.0
    %v993 = vand.u32 %v701, 4294901760
    %v994 = vsub.f32 %v701, %v993
    %995 = vmatpush1.xpose.msra.mxu0 %v994
    %996 = vmatprep.subr.mxu0 0.0
    %v997 = vand.u32 %v702, 4294901760
    %v998 = vsub.f32 %v702, %v997
    %999 = vmatpush1.xpose.msra.mxu0 %v998
    %1000 = vmatprep.subr.mxu0 0.0
    %v1001 = vand.u32 %v703, 4294901760
    %v1002 = vsub.f32 %v703, %v1001
    %1003 = vmatpush1.xpose.msra.mxu0 %v1002
    %1004 = vmatprep.subr.mxu0 0.0
    %1005 = vmatpush1.xpose.msra.mxu0 0.0
    %1006 = vmatprep.subr.mxu0 0.0
    %1007 = vmatpush1.xpose.msra.mxu0 0.0
    %1008 = vmatprep.subr.mxu0 0.0
    %1009 = vmatpush1.xpose.msra.mxu0 0.0
    %1010 = vmatprep.subr.mxu0 0.0
    %1011 = vmatpush1.xpose.msra.mxu0 0.0
    %1012 = vmatprep.subr.mxu0 0.0
    %1013 = vmatpush1.xpose.msra.mxu0 0.0
    %1014 = vmatprep.subr.mxu0 0.0
    %1015 = vmatpush1.xpose.msra.mxu0 0.0
    %1016 = vmatprep.subr.mxu0 0.0
    %1017 = vmatpush1.xpose.msra.mxu0 0.0
    %1018 = vmatprep.subr.mxu0 0.0
    %1019 = vmatpush1.xpose.msra.mxu0 0.0
    %1020 = vmatprep.subr.mxu0 0.0
    %1021 = vmatpush1.xpose.msra.mxu0 0.0
    %1022 = vmatprep.subr.mxu0 0.0
    %1023 = vmatpush1.xpose.msra.mxu0 0.0
    %1024 = vmatprep.subr.mxu0 0.0
    %1025 = vmatpush1.xpose.msra.mxu0 0.0
    %1026 = vmatprep.subr.mxu0 0.0
    %1027 = vmatpush1.xpose.msra.mxu0 0.0
    %1028 = vmatprep.subr.mxu0 0.0
    %1029 = vmatpush1.xpose.msra.mxu0 0.0
    %1030 = vmatprep.subr.mxu0 0.0
    %1031 = vmatpush1.xpose.msra.mxu0 0.0
    %1032 = vmatprep.subr.mxu0 0.0
    %1033 = vmatpush1.xpose.msra.mxu0 0.0
    %1034 = vmatprep.subr.mxu0 0.0
    %1035 = vmatpush1.xpose.msra.mxu0 0.0
    %1036 = vmatprep.mubr.f32.mxu0 0.0
    %1037 = vmatmul.mubr.f32.gmra.mrb[0].mxu0 0.0
    %v1038 = vpop.f32.mrb[0].mxu0
    %v1039 = vadd.f32 %v937, %v1038
    %v1040 = vpop.f32.mrb[0].mxu0
    %1041 = vdwg.mxu0
    %1042 = vmatprep.subr.mxu0 0.0
    %v1043 = vand.u32 %v688, 4294901760
    %1044 = vmatpush1.xpose.msra.mxu0 %v1043
    %1045 = vmatprep.subr.mxu0 0.0
    %v1046 = vand.u32 %v689, 4294901760
    %1047 = vmatpush1.xpose.msra.mxu0 %v1046
    %1048 = vmatprep.subr.mxu0 0.0
    %v1049 = vand.u32 %v690, 4294901760
    %1050 = vmatpush1.xpose.msra.mxu0 %v1049
    %1051 = vmatprep.subr.mxu0 0.0
    %v1052 = vand.u32 %v691, 4294901760
    %1053 = vmatpush1.xpose.msra.mxu0 %v1052
    %1054 = vmatprep.subr.mxu0 0.0
    %v1055 = vand.u32 %v692, 4294901760
    %1056 = vmatpush1.xpose.msra.mxu0 %v1055
    %1057 = vmatprep.subr.mxu0 0.0
    %v1058 = vand.u32 %v693, 4294901760
    %1059 = vmatpush1.xpose.msra.mxu0 %v1058
    %1060 = vmatprep.subr.mxu0 0.0
    %v1061 = vand.u32 %v694, 4294901760
    %1062 = vmatpush1.xpose.msra.mxu0 %v1061
    %1063 = vmatprep.subr.mxu0 0.0
    %v1064 = vand.u32 %v695, 4294901760
    %1065 = vmatpush1.xpose.msra.mxu0 %v1064
    %1066 = vmatprep.subr.mxu0 0.0
    %v1067 = vand.u32 %v696, 4294901760
    %1068 = vmatpush1.xpose.msra.mxu0 %v1067
    %1069 = vmatprep.subr.mxu0 0.0
    %v1070 = vand.u32 %v697, 4294901760
    %1071 = vmatpush1.xpose.msra.mxu0 %v1070
    %1072 = vmatprep.subr.mxu0 0.0
    %v1073 = vand.u32 %v698, 4294901760
    %1074 = vmatpush1.xpose.msra.mxu0 %v1073
    %1075 = vmatprep.subr.mxu0 0.0
    %v1076 = vand.u32 %v699, 4294901760
    %1077 = vmatpush1.xpose.msra.mxu0 %v1076
    %1078 = vmatprep.subr.mxu0 0.0
    %v1079 = vand.u32 %v700, 4294901760
    %1080 = vmatpush1.xpose.msra.mxu0 %v1079
    %1081 = vmatprep.subr.mxu0 0.0
    %v1082 = vand.u32 %v701, 4294901760
    %1083 = vmatpush1.xpose.msra.mxu0 %v1082
    %1084 = vmatprep.subr.mxu0 0.0
    %v1085 = vand.u32 %v702, 4294901760
    %1086 = vmatpush1.xpose.msra.mxu0 %v1085
    %1087 = vmatprep.subr.mxu0 0.0
    %v1088 = vand.u32 %v703, 4294901760
    %1089 = vmatpush1.xpose.msra.mxu0 %v1088
    %1090 = vmatprep.subr.mxu0 0.0
    %1091 = vmatpush1.xpose.msra.mxu0 0.0
    %1092 = vmatprep.subr.mxu0 0.0
    %1093 = vmatpush1.xpose.msra.mxu0 0.0
    %1094 = vmatprep.subr.mxu0 0.0
    %1095 = vmatpush1.xpose.msra.mxu0 0.0
    %1096 = vmatprep.subr.mxu0 0.0
    %1097 = vmatpush1.xpose.msra.mxu0 0.0
    %1098 = vmatprep.subr.mxu0 0.0
    %1099 = vmatpush1.xpose.msra.mxu0 0.0
    %1100 = vmatprep.subr.mxu0 0.0
    %1101 = vmatpush1.xpose.msra.mxu0 0.0
    %1102 = vmatprep.subr.mxu0 0.0
    %1103 = vmatpush1.xpose.msra.mxu0 0.0
    %1104 = vmatprep.subr.mxu0 0.0
    %1105 = vmatpush1.xpose.msra.mxu0 0.0
    %1106 = vmatprep.subr.mxu0 0.0
    %1107 = vmatpush1.xpose.msra.mxu0 0.0
    %1108 = vmatprep.subr.mxu0 0.0
    %1109 = vmatpush1.xpose.msra.mxu0 0.0
    %1110 = vmatprep.subr.mxu0 0.0
    %1111 = vmatpush1.xpose.msra.mxu0 0.0
    %1112 = vmatprep.subr.mxu0 0.0
    %1113 = vmatpush1.xpose.msra.mxu0 0.0
    %1114 = vmatprep.subr.mxu0 0.0
    %1115 = vmatpush1.xpose.msra.mxu0 0.0
    %1116 = vmatprep.subr.mxu0 0.0
    %1117 = vmatpush1.xpose.msra.mxu0 0.0
    %1118 = vmatprep.subr.mxu0 0.0
    %1119 = vmatpush1.xpose.msra.mxu0 0.0
    %1120 = vmatprep.subr.mxu0 0.0
    %1121 = vmatpush1.xpose.msra.mxu0 0.0
    %1122 = vmatprep.mubr.f32.mxu0 0.0
    %1123 = vmatmul.mubr.f32.gmra.mrb[0].mxu0 0.0
    %v1124 = vpop.f32.mrb[0].mxu0
    %v1125 = vadd.f32 %v1039, %v1124
    %v1126 = vpop.f32.mrb[0].mxu0
    %1127 = vdwg.mxu0
    %1128 = vmatprep.subr.mxu0 0.0
    %v1129 = vand.u32 %v688, 4294901760
    %v1130 = vsub.f32 %v688, %v1129
    %v1131 = vand.u32 %v1130, 4294901760
    %1132 = vmatpush1.xpose.msra.mxu0 %v1131
    %1133 = vmatprep.subr.mxu0 0.0
    %v1134 = vand.u32 %v689, 4294901760
    %v1135 = vsub.f32 %v689, %v1134
    %v1136 = vand.u32 %v1135, 4294901760
    %1137 = vmatpush1.xpose.msra.mxu0 %v1136
    %1138 = vmatprep.subr.mxu0 0.0
    %v1139 = vand.u32 %v690, 4294901760
    %v1140 = vsub.f32 %v690, %v1139
    %v1141 = vand.u32 %v1140, 4294901760
    %1142 = vmatpush1.xpose.msra.mxu0 %v1141
    %1143 = vmatprep.subr.mxu0 0.0
    %v1144 = vand.u32 %v691, 4294901760
    %v1145 = vsub.f32 %v691, %v1144
    %v1146 = vand.u32 %v1145, 4294901760
    %1147 = vmatpush1.xpose.msra.mxu0 %v1146
    %1148 = vmatprep.subr.mxu0 0.0
    %v1149 = vand.u32 %v692, 4294901760
    %v1150 = vsub.f32 %v692, %v1149
    %v1151 = vand.u32 %v1150, 4294901760
    %1152 = vmatpush1.xpose.msra.mxu0 %v1151
    %1153 = vmatprep.subr.mxu0 0.0
    %v1154 = vand.u32 %v693, 4294901760
    %v1155 = vsub.f32 %v693, %v1154
    %v1156 = vand.u32 %v1155, 4294901760
    %1157 = vmatpush1.xpose.msra.mxu0 %v1156
    %1158 = vmatprep.subr.mxu0 0.0
    %v1159 = vand.u32 %v694, 4294901760
    %v1160 = vsub.f32 %v694, %v1159
    %v1161 = vand.u32 %v1160, 4294901760
    %1162 = vmatpush1.xpose.msra.mxu0 %v1161
    %1163 = vmatprep.subr.mxu0 0.0
    %v1164 = vand.u32 %v695, 4294901760
    %v1165 = vsub.f32 %v695, %v1164
    %v1166 = vand.u32 %v1165, 4294901760
    %1167 = vmatpush1.xpose.msra.mxu0 %v1166
    %1168 = vmatprep.subr.mxu0 0.0
    %v1169 = vand.u32 %v696, 4294901760
    %v1170 = vsub.f32 %v696, %v1169
    %v1171 = vand.u32 %v1170, 4294901760
    %1172 = vmatpush1.xpose.msra.mxu0 %v1171
    %1173 = vmatprep.subr.mxu0 0.0
    %v1174 = vand.u32 %v697, 4294901760
    %v1175 = vsub.f32 %v697, %v1174
    %v1176 = vand.u32 %v1175, 4294901760
    %1177 = vmatpush1.xpose.msra.mxu0 %v1176
    %1178 = vmatprep.subr.mxu0 0.0
    %v1179 = vand.u32 %v698, 4294901760
    %v1180 = vsub.f32 %v698, %v1179
    %v1181 = vand.u32 %v1180, 4294901760
    %1182 = vmatpush1.xpose.msra.mxu0 %v1181
    %1183 = vmatprep.subr.mxu0 0.0
    %v1184 = vand.u32 %v699, 4294901760
    %v1185 = vsub.f32 %v699, %v1184
    %v1186 = vand.u32 %v1185, 4294901760
    %1187 = vmatpush1.xpose.msra.mxu0 %v1186
    %1188 = vmatprep.subr.mxu0 0.0
    %v1189 = vand.u32 %v700, 4294901760
    %v1190 = vsub.f32 %v700, %v1189
    %v1191 = vand.u32 %v1190, 4294901760
    %1192 = vmatpush1.xpose.msra.mxu0 %v1191
    %1193 = vmatprep.subr.mxu0 0.0
    %v1194 = vand.u32 %v701, 4294901760
    %v1195 = vsub.f32 %v701, %v1194
    %v1196 = vand.u32 %v1195, 4294901760
    %1197 = vmatpush1.xpose.msra.mxu0 %v1196
    %1198 = vmatprep.subr.mxu0 0.0
    %v1199 = vand.u32 %v702, 4294901760
    %v1200 = vsub.f32 %v702, %v1199
    %v1201 = vand.u32 %v1200, 4294901760
    %1202 = vmatpush1.xpose.msra.mxu0 %v1201
    %1203 = vmatprep.subr.mxu0 0.0
    %v1204 = vand.u32 %v703, 4294901760
    %v1205 = vsub.f32 %v703, %v1204
    %v1206 = vand.u32 %v1205, 4294901760
    %1207 = vmatpush1.xpose.msra.mxu0 %v1206
    %1208 = vmatprep.subr.mxu0 0.0
    %1209 = vmatpush1.xpose.msra.mxu0 0.0
    %1210 = vmatprep.subr.mxu0 0.0
    %1211 = vmatpush1.xpose.msra.mxu0 0.0
    %1212 = vmatprep.subr.mxu0 0.0
    %1213 = vmatpush1.xpose.msra.mxu0 0.0
    %1214 = vmatprep.subr.mxu0 0.0
    %1215 = vmatpush1.xpose.msra.mxu0 0.0
    %1216 = vmatprep.subr.mxu0 0.0
    %1217 = vmatpush1.xpose.msra.mxu0 0.0
    %1218 = vmatprep.subr.mxu0 0.0
    %1219 = vmatpush1.xpose.msra.mxu0 0.0
    %1220 = vmatprep.subr.mxu0 0.0
    %1221 = vmatpush1.xpose.msra.mxu0 0.0
    %1222 = vmatprep.subr.mxu0 0.0
    %1223 = vmatpush1.xpose.msra.mxu0 0.0
    %1224 = vmatprep.subr.mxu0 0.0
    %1225 = vmatpush1.xpose.msra.mxu0 0.0
    %1226 = vmatprep.subr.mxu0 0.0
    %1227 = vmatpush1.xpose.msra.mxu0 0.0
    %1228 = vmatprep.subr.mxu0 0.0
    %1229 = vmatpush1.xpose.msra.mxu0 0.0
    %1230 = vmatprep.subr.mxu0 0.0
    %1231 = vmatpush1.xpose.msra.mxu0 0.0
    %1232 = vmatprep.subr.mxu0 0.0
    %1233 = vmatpush1.xpose.msra.mxu0 0.0
    %1234 = vmatprep.subr.mxu0 0.0
    %1235 = vmatpush1.xpose.msra.mxu0 0.0
    %1236 = vmatprep.subr.mxu0 0.0
    %1237 = vmatpush1.xpose.msra.mxu0 0.0
    %1238 = vmatprep.subr.mxu0 0.0
    %1239 = vmatpush1.xpose.msra.mxu0 0.0
    %1240 = vmatprep.mubr.f32.mxu0 0.0
    %1241 = vmatmul.mubr.f32.gmra.mrb[0].mxu0 1.0
    %v1242 = vpop.f32.mrb[0].mxu0
    %v1243 = vadd.f32 %v1125, %v1242
    %v1244 = vpop.f32.mrb[0].mxu0
    %1245 = vdwg.mxu0
    %1246 = vmatprep.subr.mxu0 0.0
    %v1247 = vand.u32 %v688, 4294901760
    %1248 = vmatpush1.xpose.msra.mxu0 %v1247
    %1249 = vmatprep.subr.mxu0 0.0
    %v1250 = vand.u32 %v689, 4294901760
    %1251 = vmatpush1.xpose.msra.mxu0 %v1250
    %1252 = vmatprep.subr.mxu0 0.0
    %v1253 = vand.u32 %v690, 4294901760
    %1254 = vmatpush1.xpose.msra.mxu0 %v1253
    %1255 = vmatprep.subr.mxu0 0.0
    %v1256 = vand.u32 %v691, 4294901760
    %1257 = vmatpush1.xpose.msra.mxu0 %v1256
    %1258 = vmatprep.subr.mxu0 0.0
    %v1259 = vand.u32 %v692, 4294901760
    %1260 = vmatpush1.xpose.msra.mxu0 %v1259
    %1261 = vmatprep.subr.mxu0 0.0
    %v1262 = vand.u32 %v693, 4294901760
    %1263 = vmatpush1.xpose.msra.mxu0 %v1262
    %1264 = vmatprep.subr.mxu0 0.0
    %v1265 = vand.u32 %v694, 4294901760
    %1266 = vmatpush1.xpose.msra.mxu0 %v1265
    %1267 = vmatprep.subr.mxu0 0.0
    %v1268 = vand.u32 %v695, 4294901760
    %1269 = vmatpush1.xpose.msra.mxu0 %v1268
    %1270 = vmatprep.subr.mxu0 0.0
    %v1271 = vand.u32 %v696, 4294901760
    %1272 = vmatpush1.xpose.msra.mxu0 %v1271
    %1273 = vmatprep.subr.mxu0 0.0
    %v1274 = vand.u32 %v697, 4294901760
    %1275 = vmatpush1.xpose.msra.mxu0 %v1274
    %1276 = vmatprep.subr.mxu0 0.0
    %v1277 = vand.u32 %v698, 4294901760
    %1278 = vmatpush1.xpose.msra.mxu0 %v1277
    %1279 = vmatprep.subr.mxu0 0.0
    %v1280 = vand.u32 %v699, 4294901760
    %1281 = vmatpush1.xpose.msra.mxu0 %v1280
    %1282 = vmatprep.subr.mxu0 0.0
    %v1283 = vand.u32 %v700, 4294901760
    %1284 = vmatpush1.xpose.msra.mxu0 %v1283
    %1285 = vmatprep.subr.mxu0 0.0
    %v1286 = vand.u32 %v701, 4294901760
    %1287 = vmatpush1.xpose.msra.mxu0 %v1286
    %1288 = vmatprep.subr.mxu0 0.0
    %v1289 = vand.u32 %v702, 4294901760
    %1290 = vmatpush1.xpose.msra.mxu0 %v1289
    %1291 = vmatprep.subr.mxu0 0.0
    %v1292 = vand.u32 %v703, 4294901760
    %1293 = vmatpush1.xpose.msra.mxu0 %v1292
    %1294 = vmatprep.subr.mxu0 0.0
    %1295 = vmatpush1.xpose.msra.mxu0 0.0
    %1296 = vmatprep.subr.mxu0 0.0
    %1297 = vmatpush1.xpose.msra.mxu0 0.0
    %1298 = vmatprep.subr.mxu0 0.0
    %1299 = vmatpush1.xpose.msra.mxu0 0.0
    %1300 = vmatprep.subr.mxu0 0.0
    %1301 = vmatpush1.xpose.msra.mxu0 0.0
    %1302 = vmatprep.subr.mxu0 0.0
    %1303 = vmatpush1.xpose.msra.mxu0 0.0
    %1304 = vmatprep.subr.mxu0 0.0
    %1305 = vmatpush1.xpose.msra.mxu0 0.0
    %1306 = vmatprep.subr.mxu0 0.0
    %1307 = vmatpush1.xpose.msra.mxu0 0.0
    %1308 = vmatprep.subr.mxu0 0.0
    %1309 = vmatpush1.xpose.msra.mxu0 0.0
    %1310 = vmatprep.subr.mxu0 0.0
    %1311 = vmatpush1.xpose.msra.mxu0 0.0
    %1312 = vmatprep.subr.mxu0 0.0
    %1313 = vmatpush1.xpose.msra.mxu0 0.0
    %1314 = vmatprep.subr.mxu0 0.0
    %1315 = vmatpush1.xpose.msra.mxu0 0.0
    %1316 = vmatprep.subr.mxu0 0.0
    %1317 = vmatpush1.xpose.msra.mxu0 0.0
    %1318 = vmatprep.subr.mxu0 0.0
    %1319 = vmatpush1.xpose.msra.mxu0 0.0
    %1320 = vmatprep.subr.mxu0 0.0
    %1321 = vmatpush1.xpose.msra.mxu0 0.0
    %1322 = vmatprep.subr.mxu0 0.0
    %1323 = vmatpush1.xpose.msra.mxu0 0.0
    %1324 = vmatprep.subr.mxu0 0.0
    %1325 = vmatpush1.xpose.msra.mxu0 0.0
    %1326 = vmatprep.mubr.f32.mxu0 0.0
    %1327 = vmatmul.mubr.f32.gmra.mrb[0].mxu0 1.0
    %v1328 = vpop.f32.mrb[0].mxu0
    %v1329 = vadd.f32 %v1243, %v1328
    %v1330 = vpop.f32.mrb[0].mxu0
    %1331 = vdwg.mxu0
    %v1332 = vmax.f32 %v1329, 1e-16
    %v1333 = vrsqrt.pop %v1332
    %s1334 = sld [smem:[#allocation2]]
    %v1335 = vmul.f32 %v685, %v1333
    %v1336 = vstv %s1334
    %v1337 = vmul.f32 %v1335, %v1336
    %1338 = vst [vmem:[#allocation6] sm:$0x1] %v1337
    // Predicated region
    $region18: #{tpu_custom_call.1} parent=1 // pred_check
      _
    $region19: #{tpu_custom_call.1} parent=1 // pred_check_branch
      %1340 = sbr.rel (0) target = $region21
    $region20: #{tpu_custom_call.1} parent=1 // pred_region
      %s1342 = ssub.s32 16, 16
      %1343 = vsyncadd [#allocation5], %s1342
      %s1345 = sshll.u32 [#allocation6], 4
      %s1346 = int_to_ptr.vmem [resolvable:$true] %s1345
      %1348 = dma.vmem_to_hbm [thread:$0]  %s1346, 16, %s3, [#allocation5]
    $region21: #{tpu_custom_call.1} parent=1 // pred_fallthru
      _
    // Predicated region
    $region22: #{tpu_custom_call.1} parent=1 // pred_check
      _
    $region23: #{tpu_custom_call.1} parent=1 // pred_check_branch
      %1350 = sbr.rel (0) target = $region25
    $region24: #{tpu_custom_call.1} parent=1 // pred_region
      %1351 = dma.done [#allocation5], 16
    $region25: #{tpu_custom_call.1} parent=1 // pred_fallthru
      _
    %1352 = vsyncpa [#allocation4], 1
    %1353 = vsyncpa [#allocation5], 1

</llo_original>
